<compile_context>
chip_gen: v7x
topology: tpu7x:2x2x1
jax: 0.10.0
libtpu: 0.0.40
codegen_flags: <defaults>
</compile_context>

<pallas_src>
import jax
import jax.numpy as jnp
from jax.experimental import pallas as pl
from jax.experimental.pallas import tpu as pltpu

EPS = 1e-5


def _round_up(x, m):
    return (x + m - 1) // m * m


def _layernorm(x, w, b):
    # x: [*, D] f32, w/b: [1, D] f32.  Two-pass variance (numerically safe).
    mu = jnp.mean(x, axis=-1, keepdims=True)
    xc = x - mu
    var = jnp.mean(xc * xc, axis=-1, keepdims=True)
    return xc * jax.lax.rsqrt(var + EPS) * w + b


def _vmem_budget_bytes():
    """~75% of physical per-core VMEM (48 MiB v7x, ~96 MiB v5e/v6e)."""
    cap = 64 * 1024 * 1024            # conservative default (v7x per-TC VMEM)
    try:
        info = pltpu.get_tpu_info()
        c = getattr(info, "vmem_capacity_bytes", None)
        if c:
            cap = int(c)
    except Exception:
        pass
    return int(0.75 * cap)


def _block_vmem_need_bytes(D, Lp, ff_tile, heads):
    """Conservative working-set estimate for one transformer-block call."""
    dh = max(D // heads, 1)
    w_const = 2 * ((D * 3 * D + D * D) * 2) + (12 * D) * 4        # qkv/out proj (2x for safety)
    w_tiled = 2 * (D * ff_tile * 2 + ff_tile * D * 2 + ff_tile * 4)  # dbl-buffered wfc/wpj/bfc
    act_io = 2 * (Lp * D * 2) * 2 + Lp * D * 4                    # x in/out (bf16, dbl) + pos
    scratch = Lp * D * (4 + 2 + 4 + 2)                            # xattn, xn2, acc, attn slab
    tmp_attn = Lp * 3 * D * (4 + 2) + 2 * Lp * Lp * 4 + Lp * dh * 8 + Lp * D * 8
    tmp_mlp = Lp * ff_tile * 6 + Lp * D * 4
    return w_const + w_tiled + act_io + scratch + max(tmp_attn, tmp_mlp)


def _pick_ff_tile(D, Lp, dff, heads, budget):
    candidates = [t for t in (dff, 4096, 2048, 1024, 512, 256, 128)
                  if t <= dff and dff % t == 0]
    for t in candidates:
        if _block_vmem_need_bytes(D, Lp, t, heads) <= budget:
            return t
    return candidates[-1] if candidates else dff


# ---------------------------------------------------------------------------
# Pallas kernels
# ---------------------------------------------------------------------------
def _matmul_kernel(a_ref, b_ref, o_ref):
    # bf16 x bf16 -> f32 accumulation on the MXU.
    o_ref[...] = jnp.dot(a_ref[...], b_ref[...], preferred_element_type=jnp.float32)


def _head_kernel(x_ref, lnw_ref, lnb_ref, proj_ref, o_ref):
    # Fused ln_post + output projection on the class tokens.
    xn = _layernorm(x_ref[...].astype(jnp.float32), lnw_ref[...], lnb_ref[...])
    o_ref[...] = jnp.dot(xn.astype(proj_ref.dtype), proj_ref[...],
                         preferred_element_type=jnp.float32)


def make_block_kernel(heads, d_model, l_pad, l_valid, do_prep, out_dtype):
    dh = d_model // heads
    scale = 1.0 / (dh ** 0.5)
    bf16 = jnp.bfloat16

    def kernel(*refs):
        if do_prep:
            (x_ref, pos_ref, lnprew, lnpreb,
             ln1w, ln1b, wqkv, bqkv, wo, bo,
             ln2w, ln2b, wfc, bfc, wpj, bpj,
             o_ref, xattn_sc, xn2_sc, acc_sc, attn_sc) = refs
        else:
            (x_ref,
             ln1w, ln1b, wqkv, bqkv, wo, bo,
             ln2w, ln2b, wfc, bfc, wpj, bpj,
             o_ref, xattn_sc, xn2_sc, acc_sc, attn_sc) = refs

        f = pl.program_id(1)   # MLP hidden-dim tile index

        # ---- attention branch: run once per sequence (f == 0) ----------
        @pl.when(f == 0)
        def _attention():
            x = x_ref[0].astype(jnp.float32)                    # [Lp, D]
            if do_prep:
                # Fused positional-embedding add + ln_pre (block 0 only).
                x = _layernorm(x + pos_ref[...], lnprew[...], lnpreb[...])
            xn = _layernorm(x, ln1w[...], ln1b[...])
            qkv = jnp.dot(xn.astype(bf16), wqkv[...],
                          preferred_element_type=jnp.float32) + bqkv[...]
            q = (qkv[:, :d_model] * scale).astype(bf16)
            k = qkv[:, d_model:2 * d_model].astype(bf16)
            v = qkv[:, 2 * d_model:].astype(bf16)

            if l_pad > l_valid:
                # [1, Lp] key mask, broadcast inside the where (no Lp x Lp iota).
                col = jax.lax.broadcasted_iota(jnp.int32, (1, l_pad), 1)
                key_mask = col < l_valid
            else:
                key_mask = None

            # TODO(synk): could be a single batched einsum over a
            # [heads, Lp, dh] layout; kept as a static per-head loop of 2-D
            # dots (K = dh is inherent) with results written straight into a
            # bf16 VMEM slab -> no lane-dim concatenate / O(heads) relayouts.
            for h in range(heads):
                sl = slice(h * dh, (h + 1) * dh)
                s = jax.lax.dot_general(q[:, sl], k[:, sl],
                                        (((1,), (1,)), ((), ())),
                                        preferred_element_type=jnp.float32)
                if key_mask is not None:
                    s = jnp.where(key_mask, s, -1e30)
                s = s - jnp.max(s, axis=-1, keepdims=True)
                p = jnp.exp(s)
                denom = jnp.sum(p, axis=-1, keepdims=True)
                p = p * pl.reciprocal(denom, approx=True)        # EUP divide
                pv = jnp.dot(p.astype(bf16), v[:, sl],
                             preferred_element_type=jnp.float32)
                attn_sc[:, sl] = pv.astype(bf16)                 # head slab write

            # Full-width [Lp,D] x [D,D] output projection (fills the MXU).
            attn_out = jnp.dot(attn_sc[...], wo[...],
                               preferred_element_type=jnp.float32) + bo[...]
            xa = x + attn_out
            xattn_sc[...] = xa
            xn2_sc[...] = _layernorm(xa, ln2w[...], ln2b[...]).astype(bf16)
            acc_sc[...] = jnp.zeros_like(acc_sc)

        # ---- MLP: one tile of the 4*D hidden dim per grid step ----------
        h1 = jnp.dot(xn2_sc[...], wfc[...],
                     preferred_element_type=jnp.float32) + bfc[...]
        h1 = h1 * jax.nn.sigmoid(1.702 * h1)        # QuickGELU (CLIP), f32
        acc_sc[...] += jnp.dot(h1.astype(bf16), wpj[...],
                               preferred_element_type=jnp.float32)

        @pl.when(f == pl.num_programs(1) - 1)
        def _finalize():
            o_ref[0] = (xattn_sc[...] + acc_sc[...] + bpj[...]).astype(out_dtype)

    return kernel


# ---------------------------------------------------------------------------
# pallas_call wrappers
# ---------------------------------------------------------------------------
def pallas_matmul(a, b, tm=512):
    """Row-tiled matmul a[M,K] @ b[K,N] -> f32[M,N] (a, b already bf16)."""
    M, K = a.shape
    _, Nd = b.shape
    tm = min(tm, _round_up(M, 8))
    Mp = _round_up(M, tm)
    if Mp != M:
        a = jnp.pad(a, ((0, Mp - M), (0, 0)))
    out = pl.pallas_call(
        _matmul_kernel,
        out_shape=jax.ShapeDtypeStruct((Mp, Nd), jnp.float32),
        grid=(Mp // tm,),
        in_specs=[pl.BlockSpec((tm, K), lambda i: (i, 0)),
                  pl.BlockSpec((K, Nd), lambda i: (0, 0))],
        out_specs=pl.BlockSpec((tm, Nd), lambda i: (i, 0)),
        compiler_params=pltpu.CompilerParams(dimension_semantics=("parallel",)),
    )(a, b)
    return out[:M] if Mp != M else out


def pallas_head(x, lnw, lnb, proj):
    M, D = x.shape
    _, O = proj.shape
    return pl.pallas_call(
        _head_kernel,
        out_shape=jax.ShapeDtypeStruct((M, O), jnp.float32),
        grid=(1,),
        in_specs=[pl.BlockSpec((M, D), lambda i: (0, 0)),
                  pl.BlockSpec((1, D), lambda i: (0, 0)),
                  pl.BlockSpec((1, D), lambda i: (0, 0)),
                  pl.BlockSpec((D, O), lambda i: (0, 0))],
        out_specs=pl.BlockSpec((M, O), lambda i: (0, 0)),
    )(x, lnw, lnb, proj)


def pallas_transformer_block(x, p, heads, l_valid, prep=None):
    """One residual block.  x: bf16 [Nn, Lp, D].  prep=(pos, ln_pre_w, ln_pre_b)
    fuses pos-embed add + ln_pre into this (first) block."""
    Nn, Lp, D = x.shape
    dff = p['wfc'].shape[1]
    budget = _vmem_budget_bytes()
    ff_tile = _pick_ff_tile(D, Lp, dff, heads, budget)
    F = dff // ff_tile
    do_prep = prep is not None
    kernel = make_block_kernel(heads, D, Lp, l_valid, do_prep, x.dtype)

    single = dict(pipeline_mode=pl.Buffered(1))   # constant-index blocks: 1 buffer

    args = [x]
    in_specs = [pl.BlockSpec((1, Lp, D), lambda n, f: (n, 0, 0))]   # x (n-dependent)
    if do_prep:
        pos, lnprew, lnpreb = prep
        args += [pos, lnprew, lnpreb]
        in_specs += [
            pl.BlockSpec((Lp, D), lambda n, f: (0, 0), **single),   # positional emb
            pl.BlockSpec((1, D), lambda n, f: (0, 0), **single),    # ln_pre_w
            pl.BlockSpec((1, D), lambda n, f: (0, 0), **single),    # ln_pre_b
        ]
    args += [p['ln1_w'], p['ln1_b'], p['wqkv'], p['bqkv'], p['wo'], p['bo'],
             p['ln2_w'], p['ln2_b'], p['wfc'], p['bfc'], p['wpj'], p['bpj']]
    in_specs += [
        pl.BlockSpec((1, D), lambda n, f: (0, 0), **single),        # ln1_w
        pl.BlockSpec((1, D), lambda n, f: (0, 0), **single),        # ln1_b
        pl.BlockSpec((D, 3 * D), lambda n, f: (0, 0), **single),    # wqkv (bf16)
        pl.BlockSpec((1, 3 * D), lambda n, f: (0, 0), **single),    # bqkv
        pl.BlockSpec((D, D), lambda n, f: (0, 0), **single),        # wo (bf16)
        pl.BlockSpec((1, D), lambda n, f: (0, 0), **single),        # bo
        pl.BlockSpec((1, D), lambda n, f: (0, 0), **single),        # ln2_w
        pl.BlockSpec((1, D), lambda n, f: (0, 0), **single),        # ln2_b
        pl.BlockSpec((D, ff_tile), lambda n, f: (0, f)),            # wfc tile (dbl-buf)
        pl.BlockSpec((1, ff_tile), lambda n, f: (0, f)),            # bfc tile
        pl.BlockSpec((ff_tile, D), lambda n, f: (f, 0)),            # wpj tile (dbl-buf)
        pl.BlockSpec((1, D), lambda n, f: (0, 0), **single),        # bpj
    ]

    dh = D // heads
    flops = Nn * (2 * Lp * D * 3 * D              # qkv projection
                  + 2 * heads * Lp * Lp * dh * 2  # qk^T + pv
                  + 2 * Lp * D * D                # output projection
                  + 2 * Lp * D * dff * 2)         # mlp
    transc = Nn * (heads * Lp * Lp + Lp * dff)
    bytes_acc = (2 * (D * 3 * D + D * D + 2 * D * dff)   # bf16 weights
                 + 4 * (16 * D + dff)                    # f32 biases / LN params
                 + 2 * Nn * Lp * D * 2 * 2)              # bf16 activations in + out
    cost = pl.CostEstimate(flops=int(flops), transcendentals=int(transc),
                           bytes_accessed=int(bytes_acc))

    # NOTE: Nn ("parallel") is sharded across the 2 TensorCores on v7x;
    # keep Nn = B*T even for megacore balance when possible.
    return pl.pallas_call(
        kernel,
        out_shape=jax.ShapeDtypeStruct((Nn, Lp, D), x.dtype),       # bf16 carry
        grid=(Nn, F),
        in_specs=in_specs,
        out_specs=pl.BlockSpec((1, Lp, D), lambda n, f: (n, 0, 0)),
        scratch_shapes=[pltpu.VMEM((Lp, D), jnp.float32),    # x after attention (f32)
                        pltpu.VMEM((Lp, D), jnp.bfloat16),   # cached ln2(x) (bf16)
                        pltpu.VMEM((Lp, D), jnp.float32),    # MLP accumulator (f32)
                        pltpu.VMEM((Lp, D), jnp.bfloat16)],  # per-head attention slab
        compiler_params=pltpu.CompilerParams(
            dimension_semantics=("parallel", "arbitrary"),
            vmem_limit_bytes=int(budget)),
        cost_estimate=cost,
    )(*args)


# ---------------------------------------------------------------------------
# Full forward pass (glue in JAX, hot paths in Pallas)
# ---------------------------------------------------------------------------
def vision_transformer_forward(x, params, patch_size, heads):
    B, T, C, H, W = x.shape
    N = B * T
    P = patch_size
    Hp, Wp = H // P, W // P
    D = params['positional_embedding'].shape[1]

    x = x.reshape(N, C, H, W)
    # conv1 (stride == kernel == patch, no bias) as patch extraction + matmul.
    patches = (x.reshape(N, C, Hp, P, Wp, P)
                .transpose(0, 2, 4, 1, 3, 5)
                .reshape(N * Hp * Wp, C * P * P))
    K = C * P * P
    Kp = _round_up(K, 128)                               # lane-aligned contraction
    patches = jnp.pad(patches, ((0, 0), (0, Kp - K))).astype(jnp.bfloat16)
    conv_w = params['conv1_w'].reshape(params['conv1_w'].shape[0], -1).T   # [K, D]
    conv_w = jnp.pad(conv_w, ((0, Kp - K), (0, 0))).astype(jnp.bfloat16)
    emb = pallas_matmul(patches, conv_w, tm=512).reshape(N, Hp * Wp, D)

    L = Hp * Wp + 1
    Lp = _round_up(L, 8)                                 # 8-sublane padding only
    cls = jnp.broadcast_to(params['class_embedding'][None, None, :],
                           (N, 1, D)).astype(jnp.float32)
    xseq = jnp.concatenate([cls, emb], axis=1)           # [N, L, D] f32
    xseq = jnp.pad(xseq, ((0, 0), (0, Lp - L), (0, 0)))  # zero-pad rows
    pos = jnp.pad(params['positional_embedding'], ((0, Lp - L), (0, 0)))
    xseq = xseq.astype(jnp.bfloat16)                     # bf16 inter-kernel carry

    # VPT_shallow == False (vision_depth == 0): no visual-context tokens appended.
    assert params['blocks'], "at least one transformer layer expected"

    # Transformer (batch-first layout; equivalent to PyTorch's LND permute).
    # pos-embed add + ln_pre fused into block 0.
    for li, blk in enumerate(params['blocks']):
        prep = (pos, params['ln_pre_w'], params['ln_pre_b']) if li == 0 else None
        xseq = pallas_transformer_block(xseq, blk, heads, L, prep=prep)

    # ln_post on class token + projection (fused head kernel).
    cls_tok = xseq[:, 0, :]
    out = pallas_head(cls_tok, params['ln_post_w'], params['ln_post_b'], params['proj'])
    return out.reshape(B, T, -1), None   # (x, attns) with return_attention=False


# ---------------------------------------------------------------------------
# Deterministic parameter initialization (shapes per the module's __init__)
# ---------------------------------------------------------------------------
def init_params(key, input_resolution, patch_size, width, layers, output_dim):
    scale = width ** (-0.5)
    num_patches = (input_resolution // patch_size) ** 2
    keys = jax.random.split(key, 4 + layers)
    bf16 = jnp.bfloat16
    params = {
        'conv1_w': 0.02 * jax.random.normal(keys[0], (width, 3, patch_size, patch_size), jnp.float32),
        'class_embedding': scale * jax.random.normal(keys[1], (width,), jnp.float32),
        'positional_embedding': scale * jax.random.normal(keys[2], (num_patches + 1, width), jnp.float32),
        'ln_pre_w': jnp.ones((1, width), jnp.float32),
        'ln_pre_b': jnp.zeros((1, width), jnp.float32),
        'ln_post_w': jnp.ones((1, width), jnp.float32),
        'ln_post_b': jnp.zeros((1, width), jnp.float32),
        # Matmul weights stored bf16 (f32 accumulation inside kernels).
        'proj': (scale * jax.random.normal(keys[3], (width, output_dim), jnp.float32)).astype(bf16),
    }
    blocks = []
    for l in range(layers):
        k = jax.random.split(keys[4 + l], 4)
        blocks.append({
            'ln1_w': jnp.ones((1, width), jnp.float32),
            'ln1_b': jnp.zeros((1, width), jnp.float32),
            # Linear weights pre-transposed (x @ W), stored bf16.
            'wqkv': (0.02 * jax.random.normal(k[0], (width, 3 * width), jnp.float32)).astype(bf16),
            'bqkv': jnp.zeros((1, 3 * width), jnp.float32),
            'wo': (0.02 * jax.random.normal(k[1], (width, width), jnp.float32)).astype(bf16),
            'bo': jnp.zeros((1, width), jnp.float32),
            'ln2_w': jnp.ones((1, width), jnp.float32),
            'ln2_b': jnp.zeros((1, width), jnp.float32),
            'wfc': (0.02 * jax.random.normal(k[2], (width, 4 * width), jnp.float32)).astype(bf16),
            'bfc': jnp.zeros((1, 4 * width), jnp.float32),
            'wpj': (0.02 * jax.random.normal(k[3], (4 * width, width), jnp.float32)).astype(bf16),
            'bpj': jnp.zeros((1, width), jnp.float32),
        })
    params['blocks'] = blocks
    return params


if __name__ == "__main__":
    key = jax.random.PRNGKey(0)
    kx, kp = jax.random.split(key)

    # Small shapes consistent with the forward: x is [B, T, 3, H, W]
    B, T, C, H, W = 2, 2, 3, 16, 16
    patch_size, width, layers, heads, output_dim = 4, 32, 2, 4, 16

    x = jax.random.normal(kx, (B, T, C, H, W), jnp.float32)
    params = init_params(kp, H, patch_size, width, layers, output_dim)

    out, attns = vision_transformer_forward(x, params, patch_size, heads)
    out = jax.block_until_ready(out)
    assert out.shape == (B, T, output_dim), out.shape
    assert attns is None
    assert bool(jnp.all(jnp.isfinite(out)))
    print("KERNEL_OK")
</pallas_src>

<mosaic_0001>
module attributes {stable_mosaic.version = 11 : i64} {
  func.func @_matmul_kernel(%arg0: i32, %arg1: memref<64x128xbf16, #tpu.memory_space<vmem>>, %arg2: memref<128x32xbf16, #tpu.memory_space<vmem>>, %arg3: memref<64x32xf32, #tpu.memory_space<vmem>>) attributes {dimension_semantics = [#tpu.dimension_semantics<parallel>], iteration_bounds = array<i64: 1>, scalar_prefetch = 0 : i64, scratch_operands = 0 : i64, tpu.core_type = #tpu.core_type<tc>, window_params = [{transform_indices = @transform_0, window_bounds = array<i64: 64, 128>}, {pipeline_mode = #tpu.pipeline_mode<synchronous>, transform_indices = @transform_1, window_bounds = array<i64: 128, 32>}, {transform_indices = @transform_2, window_bounds = array<i64: 64, 32>}]} {
    %c0 = arith.constant 0 : index
    %c0_0 = arith.constant 0 : index
    %0 = vector.load %arg1[%c0, %c0_0] : memref<64x128xbf16, #tpu.memory_space<vmem>>, vector<64x128xbf16>
    %c0_1 = arith.constant 0 : index
    %c0_2 = arith.constant 0 : index
    %1 = vector.load %arg2[%c0_1, %c0_2] : memref<128x32xbf16, #tpu.memory_space<vmem>>, vector<128x32xbf16>
    %cst = arith.constant dense<0.000000e+00> : vector<64x32xf32>
    %2 = tpu.matmul %0, %1, %cst {dimension_numbers = #tpu.dot_dimension_numbers<[1], [0], [0], [1], [0, 0, 1, 1], [], []>} : vector<64x128xbf16>, vector<128x32xbf16>, vector<64x32xf32> -> vector<64x32xf32>
    %c0_3 = arith.constant 0 : index
    %c0_4 = arith.constant 0 : index
    %3 = vector.load %arg3[%c0_3, %c0_4] : memref<64x32xf32, #tpu.memory_space<vmem>>, vector<64x32xf32>
    tpu.vector_store %arg3[%c0_3, %c0_4], %2 {strides = array<i32>} : memref<64x32xf32, #tpu.memory_space<vmem>>, vector<64x32xf32>,
    return
  }
  func.func @transform_0(%arg0: i32) -> (i32, i32) {
    %c0_i32 = arith.constant 0 : i32
    %c0_i32_0 = arith.constant 0 : i32
    return %arg0, %c0_i32 : i32, i32
  }
  func.func @transform_1(%arg0: i32) -> (i32, i32) {
    %c0_i32 = arith.constant 0 : i32
    %c0_i32_0 = arith.constant 0 : i32
    %c0_i32_1 = arith.constant 0 : i32
    return %c0_i32, %c0_i32_0 : i32, i32
  }
  func.func @transform_2(%arg0: i32) -> (i32, i32) {
    %c0_i32 = arith.constant 0 : i32
    %c0_i32_0 = arith.constant 0 : i32
    return %arg0, %c0_i32 : i32, i32
  }
}

</mosaic_0001>

<llo_original>
// kernel: tpu_custom_call.1
$region0: #{tpu_custom_call.1}
  #allocation0 [shape = 'u32[]', space=smem, size = 0x4, offset = 0x4, fixed_abs, tag = 'smem constant byte address 0x4 - core index']
  #allocation1 [shape = 'u32[144,128]{1,0:T(1,128)}', space=vmem, size = 0x12000, scoped, tag = 'internal scratch']
  %s0 = inlined_call_operand.vmem [shape: bf16[64,128], index: 0, kind: input, shape index: {}]
  %s1 = inlined_call_operand.vmem [shape: bf16[128,32], index: 1, kind: input, shape index: {}]
  %s2 = inlined_call_operand.vmem [shape: f32[64,32], index: 2, kind: output, shape index: {}]
  %s3 = sld [smem:[#allocation0]]
  $region18: #{tpu_custom_call.1} parent=0
    _
  %s5 = ssub.s32 1, %s3
  %s6 = scalar_select 0, %s5, %s3
  // Predicated region
  $region2: #{tpu_custom_call.1} parent=0 // pred_check
    _
  $region3: #{tpu_custom_call.1} parent=0 // pred_check_branch
    %8 = sbr.rel (0) target = $region5
  $region4: #{tpu_custom_call.1} parent=0 // pred_region
    _
  $region5: #{tpu_custom_call.1} parent=0 // pred_fallthru
    _
  // Predicated region
  $region6: #{tpu_custom_call.1} parent=0 // pred_check
    _
  $region7: #{tpu_custom_call.1} parent=0 // pred_check_branch
    %10 = sbr.rel (0) target = $region9
  $region8: #{tpu_custom_call.1} parent=0 // pred_region
    _
  $region9: #{tpu_custom_call.1} parent=0 // pred_fallthru
    _
  %v12 = vld [vmem:[%s0] sm:$0xf]
  %v13 = vld [vmem:[%s0 + $0x4] sm:$0xf]
  %v14 = vld [vmem:[%s0 + $0x8] sm:$0xf]
  %v15 = vld [vmem:[%s0 + $0xc] sm:$0xf]
  %v16 = vld [vmem:[%s0 + $0x10] sm:$0xf]
  %v17 = vld [vmem:[%s0 + $0x14] sm:$0xf]
  %v18 = vld [vmem:[%s0 + $0x18] sm:$0xf]
  %v19 = vld [vmem:[%s0 + $0x1c] sm:$0xf]
  %v20 = vld [vmem:[%s1] sm:$0xf]
  %v21 = vld [vmem:[%s1 + $0x4] sm:$0xf]
  %v22 = vld [vmem:[%s1 + $0x8] sm:$0xf]
  %v23 = vld [vmem:[%s1 + $0xc] sm:$0xf]
  %v24 = vld [vmem:[%s1 + $0x10] sm:$0xf]
  %v25 = vld [vmem:[%s1 + $0x14] sm:$0xf]
  %v26 = vld [vmem:[%s1 + $0x18] sm:$0xf]
  %v27 = vld [vmem:[%s1 + $0x1c] sm:$0xf]
  %v28 = vld [vmem:[%s1 + $0x20] sm:$0xf]
  %v29 = vld [vmem:[%s1 + $0x24] sm:$0xf]
  %v30 = vld [vmem:[%s1 + $0x28] sm:$0xf]
  %v31 = vld [vmem:[%s1 + $0x2c] sm:$0xf]
  %v32 = vld [vmem:[%s1 + $0x30] sm:$0xf]
  %v33 = vld [vmem:[%s1 + $0x34] sm:$0xf]
  %v34 = vld [vmem:[%s1 + $0x38] sm:$0xf]
  %v35 = vld [vmem:[%s1 + $0x3c] sm:$0xf]
  %v44 = vunpack.c.l.b16 %v12
  %v45 = vunpack.c.l.b16 %v13
  %v46 = vunpack.c.l.b16 %v14
  %v47 = vunpack.c.l.b16 %v15
  %v48 = vunpack.c.l.b16 %v16
  %v49 = vunpack.c.l.b16 %v17
  %v50 = vunpack.c.l.b16 %v18
  %v51 = vunpack.c.l.b16 %v19
  %v52 = vpack.c.b16 %v45, %v44
  %v53 = vpack.c.b16 %v47, %v46
  %v54 = vpack.c.b16 %v49, %v48
  %v55 = vpack.c.b16 %v51, %v50
  %v76 = vunpack.c.l.b16 %v20
  %v77 = vunpack.c.l.b16 %v21
  %v78 = vunpack.c.l.b16 %v22
  %v79 = vunpack.c.l.b16 %v23
  %v80 = vunpack.c.l.b16 %v24
  %v81 = vunpack.c.l.b16 %v25
  %v82 = vunpack.c.l.b16 %v26
  %v83 = vunpack.c.l.b16 %v27
  %v84 = vunpack.c.l.b16 %v28
  %v85 = vunpack.c.l.b16 %v29
  %v86 = vunpack.c.l.b16 %v30
  %v87 = vunpack.c.l.b16 %v31
  %v88 = vunpack.c.l.b16 %v32
  %v89 = vunpack.c.l.b16 %v33
  %v90 = vunpack.c.l.b16 %v34
  %v91 = vunpack.c.l.b16 %v35
  %v92 = vpack.c.b16 %v77, %v76
  %v93 = vpack.c.b16 %v79, %v78
  %v94 = vpack.c.b16 %v81, %v80
  %v95 = vpack.c.b16 %v83, %v82
  %v96 = vpack.c.b16 %v85, %v84
  %v97 = vpack.c.b16 %v87, %v86
  %v98 = vpack.c.b16 %v89, %v88
  %v99 = vpack.c.b16 %v91, %v90
  %108 = vmatprep.subr.bf16.mxu0 0
  %109 = vmatpush1.bf16.msra.mxu0 %v92
  %110 = vmatprep.subr.bf16.mxu0 0
  %111 = vmatpush1.bf16.msra.mxu0 %v93
  %112 = vmatprep.subr.bf16.mxu0 0
  %113 = vmatpush1.bf16.msra.mxu0 %v94
  %114 = vmatprep.subr.bf16.mxu0 0
  %115 = vmatpush1.bf16.msra.mxu0 %v95
  %116 = vmatprep.subr.bf16.mxu0 0
  %117 = vmatpush1.bf16.msra.mxu0 %v96
  %118 = vmatprep.subr.bf16.mxu0 0
  %119 = vmatpush1.bf16.msra.mxu0 %v97
  %120 = vmatprep.subr.bf16.mxu0 0
  %121 = vmatpush1.bf16.msra.mxu0 %v98
  %122 = vmatprep.subr.bf16.mxu0 0
  %123 = vmatpush1.bf16.msra.mxu0 %v99
  %124 = vmatprep.subr.bf16.mxu0 0
  %125 = vmatpush1.bf16.msra.mxu0 0
  %126 = vmatprep.subr.bf16.mxu0 0
  %127 = vmatpush1.bf16.msra.mxu0 0
  %128 = vmatprep.subr.bf16.mxu0 0
  %129 = vmatpush1.bf16.msra.mxu0 0
  %130 = vmatprep.subr.bf16.mxu0 0
  %131 = vmatpush1.bf16.msra.mxu0 0
  %132 = vmatprep.subr.bf16.mxu0 0
  %133 = vmatpush1.bf16.msra.mxu0 0
  %134 = vmatprep.subr.bf16.mxu0 0
  %135 = vmatpush1.bf16.msra.mxu0 0
  %136 = vmatprep.subr.bf16.mxu0 0
  %137 = vmatpush1.bf16.msra.mxu0 0
  %138 = vmatprep.subr.bf16.mxu0 0
  %139 = vmatpush1.bf16.msra.mxu0 0
  %140 = vmatprep.mubr.bf16.mxu0 0
  %141 = vmatmul.mubr.bf16.gmra.mrb[0].mxu0 %v52
  %v142 = vpop.f32.mrb[0].mxu0
  %v143 = vadd.f32 0.0, %v142
  %v144 = vpop.f32.mrb[0].mxu0
  %v145 = vpop.f32.mrb[0].mxu0
  %v146 = vadd.f32 0.0, %v145
  %v147 = vpop.f32.mrb[0].mxu0
  %148 = vmatprep.mubr.bf16.mxu0 0
  %149 = vmatmul.mubr.bf16.gmra.mrb[0].mxu0 %v53
  %v150 = vpop.f32.mrb[0].mxu0
  %v151 = vadd.f32 0.0, %v150
  %v152 = vpop.f32.mrb[0].mxu0
  %v153 = vpop.f32.mrb[0].mxu0
  %v154 = vadd.f32 0.0, %v153
  %v155 = vpop.f32.mrb[0].mxu0
  %156 = vmatprep.mubr.bf16.mxu0 0
  %157 = vmatmul.mubr.bf16.gmra.mrb[0].mxu0 %v54
  %v158 = vpop.f32.mrb[0].mxu0
  %v159 = vadd.f32 0.0, %v158
  %v160 = vpop.f32.mrb[0].mxu0
  %v161 = vpop.f32.mrb[0].mxu0
  %v162 = vadd.f32 0.0, %v161
  %v163 = vpop.f32.mrb[0].mxu0
  %164 = vmatprep.mubr.bf16.mxu0 0
  %165 = vmatmul.mubr.bf16.gmra.mrb[0].mxu0 %v55
  %v166 = vpop.f32.mrb[0].mxu0
  %v167 = vadd.f32 0.0, %v166
  %v168 = vpop.f32.mrb[0].mxu0
  %v169 = vpop.f32.mrb[0].mxu0
  %v170 = vadd.f32 0.0, %v169
  %v171 = vpop.f32.mrb[0].mxu0
  %172 = vdwg.mxu0
  %vm173 = vcmask 261120
  %174 = vst.msk [vmem:[%s2] sm:$0xff] %vm173, %v143
  %175 = vst.msk [vmem:[%s2 + $0x8] sm:$0xff] %vm173, %v146
  %176 = vst.msk [vmem:[%s2 + $0x10] sm:$0xff] %vm173, %v151
  %177 = vst.msk [vmem:[%s2 + $0x18] sm:$0xff] %vm173, %v154
  %178 = vst.msk [vmem:[%s2 + $0x20] sm:$0xff] %vm173, %v159
  %179 = vst.msk [vmem:[%s2 + $0x28] sm:$0xff] %vm173, %v162
  %180 = vst.msk [vmem:[%s2 + $0x30] sm:$0xff] %vm173, %v167
  %181 = vst.msk [vmem:[%s2 + $0x38] sm:$0xff] %vm173, %v170
  // Predicated region
  $region10: #{tpu_custom_call.1} parent=0 // pred_check
    _
  $region11: #{tpu_custom_call.1} parent=0 // pred_check_branch
    %183 = sbr.rel (0) target = $region13
  $region12: #{tpu_custom_call.1} parent=0 // pred_region
    _
  $region13: #{tpu_custom_call.1} parent=0 // pred_fallthru
    _
  // Predicated region
  $region14: #{tpu_custom_call.1} parent=0 // pred_check
    _
  $region15: #{tpu_custom_call.1} parent=0 // pred_check_branch
    %185 = sbr.rel (0) target = $region17
  $region16: #{tpu_custom_call.1} parent=0 // pred_region
    _
  $region17: #{tpu_custom_call.1} parent=0 // pred_fallthru
    _

</llo_original>
